<compile_context>
chip_gen: v7x
topology: tpu7x:2x2x1
jax: 0.10.0
libtpu: 0.0.40
codegen_flags: <defaults>
</compile_context>

<pallas_src>
import math

import jax
import jax.numpy as jnp
from jax.experimental import pallas as pl
from jax.experimental.pallas import tpu as pltpu


def _round_up(n, m):
    return ((n + m - 1) // m) * m


def linnet_kernel(x_ref, *refs):
    """refs = (w1, b1, w2, b2, w3, b3, w4, b4, w5, b5, out)."""
    *wb, o_ref = refs
    num_layers = len(wb) // 2
    h = x_ref[...]                              # (TM, D) float32
    for i in range(num_layers):
        w_ref, b_ref = wb[2 * i], wb[2 * i + 1]
        # bf16 operands -> MXU at 2x rate, f32 accumulation.
        h = jnp.dot(h.astype(w_ref.dtype), w_ref[...],
                    preferred_element_type=jnp.float32)
        h = h + b_ref[...].astype(jnp.float32)
        if i < num_layers - 1:                  # ReLU on all but the last layer
            h = jnp.maximum(h, 0.0)
    o_ref[...] = jax.nn.sigmoid(h).astype(o_ref.dtype)


def linnet_forward(x, params, tm=512):
    """x: (B, D) float32; params: list of (W, b) with W (in, out), b (1, out)."""
    B, D = x.shape
    # Row-tile size: multiple of 8 (sublane granule), clamped for small batches.
    tm = max(8, min(tm, _round_up(B, 8)))
    b_pad = _round_up(B, tm)
    if b_pad != B:
        x = jnp.pad(x, ((0, b_pad - B), (0, 0)))

    flat = [x]
    in_specs = [pl.BlockSpec((tm, D), lambda i: (i, 0))]
    for W, b in params:
        flat.extend([W, b])
        # Constant index_map: weights/biases stay resident in VMEM across tiles.
        in_specs.append(pl.BlockSpec(W.shape, lambda i: (0, 0)))
        in_specs.append(pl.BlockSpec(b.shape, lambda i: (0, 0)))

    out = pl.pallas_call(
        linnet_kernel,
        out_shape=jax.ShapeDtypeStruct((b_pad, 1), jnp.float32),
        grid=(pl.cdiv(b_pad, tm),),
        in_specs=in_specs,
        out_specs=pl.BlockSpec((tm, 1), lambda i: (i, 0)),
        compiler_params=pltpu.CompilerParams(
            dimension_semantics=("parallel",)),
    )(*flat)
    return out[:B]


def init_linnet_params(key, input_shape, weight_dtype=jnp.bfloat16):
    """nn.Linear-style init (uniform +-1/sqrt(fan_in)); weights stored bf16."""
    dims = [input_shape, 128, 64, 32, 16, 1]
    params = []
    for i in range(5):
        fan_in, fan_out = dims[i], dims[i + 1]
        key, kw, kb = jax.random.split(key, 3)
        bound = 1.0 / math.sqrt(fan_in)
        W = jax.random.uniform(kw, (fan_in, fan_out), jnp.float32,
                               -bound, bound).astype(weight_dtype)
        b = jax.random.uniform(kb, (1, fan_out), jnp.float32, -bound, bound)
        params.append((W, b))
    return params


def linnet_reference(x, params):
    h = x
    n = len(params)
    for i, (W, b) in enumerate(params):
        h = h @ W.astype(jnp.float32) + b
        if i < n - 1:
            h = jnp.maximum(h, 0.0)
    return jax.nn.sigmoid(h)


if __name__ == "__main__":
    key = jax.random.PRNGKey(0)
    key, kx, kx2 = jax.random.split(key, 3)

    input_shape = 32   # feature dim fed to fc1
    batch = 8

    params = init_linnet_params(key, input_shape)
    fwd = jax.jit(linnet_forward, static_argnames=("tm",))

    # Small batch (single tile).
    x = jax.random.normal(kx, (batch, input_shape), jnp.float32)
    out = jax.block_until_ready(fwd(x, params))
    ref = linnet_reference(x, params)
    assert out.shape == (batch, 1), out.shape
    assert jnp.allclose(out, ref, atol=2e-2, rtol=2e-2), "small-batch mismatch"

    # Larger, non-divisible batch: multiple tiles + padding + parallel grid axis.
    x2 = jax.random.normal(kx2, (300, input_shape), jnp.float32)
    out2 = jax.block_until_ready(fwd(x2, params, tm=128))
    ref2 = linnet_reference(x2, params)
    assert out2.shape == (300, 1), out2.shape
    assert jnp.allclose(out2, ref2, atol=2e-2, rtol=2e-2), "tiled-batch mismatch"

    print("KERNEL_OK")
</pallas_src>

<mosaic_0001>
module attributes {stable_mosaic.version = 11 : i64} {
  func.func @linnet_kernel(%arg0: i32, %arg1: memref<8x32xf32, #tpu.memory_space<vmem>>, %arg2: memref<32x128xbf16, #tpu.memory_space<vmem>>, %arg3: memref<1x128xf32, #tpu.memory_space<vmem>>, %arg4: memref<128x64xbf16, #tpu.memory_space<vmem>>, %arg5: memref<1x64xf32, #tpu.memory_space<vmem>>, %arg6: memref<64x32xbf16, #tpu.memory_space<vmem>>, %arg7: memref<1x32xf32, #tpu.memory_space<vmem>>, %arg8: memref<32x16xbf16, #tpu.memory_space<vmem>>, %arg9: memref<1x16xf32, #tpu.memory_space<vmem>>, %arg10: memref<16x1xbf16, #tpu.memory_space<vmem>>, %arg11: memref<1x1xf32, #tpu.memory_space<vmem>>, %arg12: memref<8x1xf32, #tpu.memory_space<vmem>>) attributes {dimension_semantics = [#tpu.dimension_semantics<parallel>], iteration_bounds = array<i64: 1>, scalar_prefetch = 0 : i64, scratch_operands = 0 : i64, tpu.core_type = #tpu.core_type<tc>, window_params = [{transform_indices = @transform_0, window_bounds = array<i64: 8, 32>}, {pipeline_mode = #tpu.pipeline_mode<synchronous>, transform_indices = @transform_1, window_bounds = array<i64: 32, 128>}, {pipeline_mode = #tpu.pipeline_mode<synchronous>, transform_indices = @transform_2, window_bounds = array<i64: 1, 128>}, {pipeline_mode = #tpu.pipeline_mode<synchronous>, transform_indices = @transform_3, window_bounds = array<i64: 128, 64>}, {pipeline_mode = #tpu.pipeline_mode<synchronous>, transform_indices = @transform_4, window_bounds = array<i64: 1, 64>}, {pipeline_mode = #tpu.pipeline_mode<synchronous>, transform_indices = @transform_5, window_bounds = array<i64: 64, 32>}, {pipeline_mode = #tpu.pipeline_mode<synchronous>, transform_indices = @transform_6, window_bounds = array<i64: 1, 32>}, {pipeline_mode = #tpu.pipeline_mode<synchronous>, transform_indices = @transform_7, window_bounds = array<i64: 32, 16>}, {pipeline_mode = #tpu.pipeline_mode<synchronous>, transform_indices = @transform_8, window_bounds = array<i64: 1, 16>}, {pipeline_mode = #tpu.pipeline_mode<synchronous>, transform_indices = @transform_9, window_bounds = array<i64: 16, 1>}, {pipeline_mode = #tpu.pipeline_mode<synchronous>, transform_indices = @transform_10, window_bounds = array<i64: 1, 1>}, {transform_indices = @transform_11, window_bounds = array<i64: 8, 1>}]} {
    %c0 = arith.constant 0 : index
    %c0_0 = arith.constant 0 : index
    %0 = vector.load %arg1[%c0, %c0_0] : memref<8x32xf32, #tpu.memory_space<vmem>>, vector<8x32xf32>
    %1 = arith.truncf %0 : vector<8x32xf32> to vector<8x32xbf16>
    %c0_1 = arith.constant 0 : index
    %c0_2 = arith.constant 0 : index
    %2 = vector.load %arg2[%c0_1, %c0_2] : memref<32x128xbf16, #tpu.memory_space<vmem>>, vector<32x128xbf16>
    %cst = arith.constant dense<0.000000e+00> : vector<8x128xf32>
    %3 = tpu.matmul %1, %2, %cst {dimension_numbers = #tpu.dot_dimension_numbers<[1], [0], [0], [1], [0, 0, 1, 1], [], []>} : vector<8x32xbf16>, vector<32x128xbf16>, vector<8x128xf32> -> vector<8x128xf32>
    %c0_3 = arith.constant 0 : index
    %c0_4 = arith.constant 0 : index
    %4 = vector.load %arg3[%c0_3, %c0_4] : memref<1x128xf32, #tpu.memory_space<vmem>>, vector<1x128xf32>
    %5 = vector.broadcast %4 : vector<1x128xf32> to vector<8x128xf32>
    %6 = arith.addf %3, %5 : vector<8x128xf32>
    %cst_5 = arith.constant 0.000000e+00 : f32
    %7 = vector.broadcast %cst_5 : f32 to vector<8x128xf32>
    %8 = arith.maximumf %6, %7 : vector<8x128xf32>
    %9 = arith.truncf %8 : vector<8x128xf32> to vector<8x128xbf16>
    %c0_6 = arith.constant 0 : index
    %c0_7 = arith.constant 0 : index
    %10 = vector.load %arg4[%c0_6, %c0_7] : memref<128x64xbf16, #tpu.memory_space<vmem>>, vector<128x64xbf16>
    %cst_8 = arith.constant dense<0.000000e+00> : vector<8x64xf32>
    %11 = tpu.matmul %9, %10, %cst_8 {dimension_numbers = #tpu.dot_dimension_numbers<[1], [0], [0], [1], [0, 0, 1, 1], [], []>} : vector<8x128xbf16>, vector<128x64xbf16>, vector<8x64xf32> -> vector<8x64xf32>
    %c0_9 = arith.constant 0 : index
    %c0_10 = arith.constant 0 : index
    %12 = vector.load %arg5[%c0_9, %c0_10] : memref<1x64xf32, #tpu.memory_space<vmem>>, vector<1x64xf32>
    %13 = vector.broadcast %12 : vector<1x64xf32> to vector<8x64xf32>
    %14 = arith.addf %11, %13 : vector<8x64xf32>
    %cst_11 = arith.constant 0.000000e+00 : f32
    %15 = vector.broadcast %cst_11 : f32 to vector<8x64xf32>
    %16 = arith.maximumf %14, %15 : vector<8x64xf32>
    %17 = arith.truncf %16 : vector<8x64xf32> to vector<8x64xbf16>
    %c0_12 = arith.constant 0 : index
    %c0_13 = arith.constant 0 : index
    %18 = vector.load %arg6[%c0_12, %c0_13] : memref<64x32xbf16, #tpu.memory_space<vmem>>, vector<64x32xbf16>
    %cst_14 = arith.constant dense<0.000000e+00> : vector<8x32xf32>
    %19 = tpu.matmul %17, %18, %cst_14 {dimension_numbers = #tpu.dot_dimension_numbers<[1], [0], [0], [1], [0, 0, 1, 1], [], []>} : vector<8x64xbf16>, vector<64x32xbf16>, vector<8x32xf32> -> vector<8x32xf32>
    %c0_15 = arith.constant 0 : index
    %c0_16 = arith.constant 0 : index
    %20 = vector.load %arg7[%c0_15, %c0_16] : memref<1x32xf32, #tpu.memory_space<vmem>>, vector<1x32xf32>
    %21 = vector.broadcast %20 : vector<1x32xf32> to vector<8x32xf32>
    %22 = arith.addf %19, %21 : vector<8x32xf32>
    %cst_17 = arith.constant 0.000000e+00 : f32
    %23 = vector.broadcast %cst_17 : f32 to vector<8x32xf32>
    %24 = arith.maximumf %22, %23 : vector<8x32xf32>
    %25 = arith.truncf %24 : vector<8x32xf32> to vector<8x32xbf16>
    %c0_18 = arith.constant 0 : index
    %c0_19 = arith.constant 0 : index
    %26 = vector.load %arg8[%c0_18, %c0_19] : memref<32x16xbf16, #tpu.memory_space<vmem>>, vector<32x16xbf16>
    %cst_20 = arith.constant dense<0.000000e+00> : vector<8x16xf32>
    %27 = tpu.matmul %25, %26, %cst_20 {dimension_numbers = #tpu.dot_dimension_numbers<[1], [0], [0], [1], [0, 0, 1, 1], [], []>} : vector<8x32xbf16>, vector<32x16xbf16>, vector<8x16xf32> -> vector<8x16xf32>
    %c0_21 = arith.constant 0 : index
    %c0_22 = arith.constant 0 : index
    %28 = vector.load %arg9[%c0_21, %c0_22] : memref<1x16xf32, #tpu.memory_space<vmem>>, vector<1x16xf32>
    %29 = vector.broadcast %28 : vector<1x16xf32> to vector<8x16xf32>
    %30 = arith.addf %27, %29 : vector<8x16xf32>
    %cst_23 = arith.constant 0.000000e+00 : f32
    %31 = vector.broadcast %cst_23 : f32 to vector<8x16xf32>
    %32 = arith.maximumf %30, %31 : vector<8x16xf32>
    %33 = arith.truncf %32 : vector<8x16xf32> to vector<8x16xbf16>
    %c0_24 = arith.constant 0 : index
    %c0_25 = arith.constant 0 : index
    %34 = vector.load %arg10[%c0_24, %c0_25] : memref<16x1xbf16, #tpu.memory_space<vmem>>, vector<16x1xbf16>
    %cst_26 = arith.constant dense<0.000000e+00> : vector<8x1xf32>
    %35 = tpu.matmul %33, %34, %cst_26 {dimension_numbers = #tpu.dot_dimension_numbers<[1], [0], [0], [1], [0, 0, 1, 1], [], []>} : vector<8x16xbf16>, vector<16x1xbf16>, vector<8x1xf32> -> vector<8x1xf32>
    %c0_27 = arith.constant 0 : index
    %c0_28 = arith.constant 0 : index
    %36 = vector.load %arg11[%c0_27, %c0_28] : memref<1x1xf32, #tpu.memory_space<vmem>>, vector<1x1xf32>
    %37 = vector.broadcast %36 : vector<1x1xf32> to vector<8x1xf32>
    %38 = arith.addf %35, %37 : vector<8x1xf32>
    %39 = arith.negf %38 : vector<8x1xf32>
    %40 = math.exp %39 : vector<8x1xf32>
    %cst_29 = arith.constant 1.000000e+00 : f32
    %41 = vector.broadcast %cst_29 : f32 to vector<8x1xf32>
    %42 = arith.addf %41, %40 : vector<8x1xf32>
    %43 = arith.divf %41, %42 : vector<8x1xf32>
    %c0_30 = arith.constant 0 : index
    %c0_31 = arith.constant 0 : index
    %44 = vector.load %arg12[%c0_30, %c0_31] : memref<8x1xf32, #tpu.memory_space<vmem>>, vector<8x1xf32>
    tpu.vector_store %arg12[%c0_30, %c0_31], %43 {strides = array<i32>} : memref<8x1xf32, #tpu.memory_space<vmem>>, vector<8x1xf32>,
    return
  }
  func.func @transform_0(%arg0: i32) -> (i32, i32) {
    %c0_i32 = arith.constant 0 : i32
    %c0_i32_0 = arith.constant 0 : i32
    return %arg0, %c0_i32 : i32, i32
  }
  func.func @transform_1(%arg0: i32) -> (i32, i32) {
    %c0_i32 = arith.constant 0 : i32
    %c0_i32_0 = arith.constant 0 : i32
    %c0_i32_1 = arith.constant 0 : i32
    return %c0_i32, %c0_i32_0 : i32, i32
  }
  func.func @transform_2(%arg0: i32) -> (i32, i32) {
    %c0_i32 = arith.constant 0 : i32
    %c0_i32_0 = arith.constant 0 : i32
    %c0_i32_1 = arith.constant 0 : i32
    return %c0_i32, %c0_i32_0 : i32, i32
  }
  func.func @transform_3(%arg0: i32) -> (i32, i32) {
    %c0_i32 = arith.constant 0 : i32
    %c0_i32_0 = arith.constant 0 : i32
    %c0_i32_1 = arith.constant 0 : i32
    return %c0_i32, %c0_i32_0 : i32, i32
  }
  func.func @transform_4(%arg0: i32) -> (i32, i32) {
    %c0_i32 = arith.constant 0 : i32
    %c0_i32_0 = arith.constant 0 : i32
    %c0_i32_1 = arith.constant 0 : i32
    return %c0_i32, %c0_i32_0 : i32, i32
  }
  func.func @transform_5(%arg0: i32) -> (i32, i32) {
    %c0_i32 = arith.constant 0 : i32
    %c0_i32_0 = arith.constant 0 : i32
    %c0_i32_1 = arith.constant 0 : i32
    return %c0_i32, %c0_i32_0 : i32, i32
  }
  func.func @transform_6(%arg0: i32) -> (i32, i32) {
    %c0_i32 = arith.constant 0 : i32
    %c0_i32_0 = arith.constant 0 : i32
    %c0_i32_1 = arith.constant 0 : i32
    return %c0_i32, %c0_i32_0 : i32, i32
  }
  func.func @transform_7(%arg0: i32) -> (i32, i32) {
    %c0_i32 = arith.constant 0 : i32
    %c0_i32_0 = arith.constant 0 : i32
    %c0_i32_1 = arith.constant 0 : i32
    return %c0_i32, %c0_i32_0 : i32, i32
  }
  func.func @transform_8(%arg0: i32) -> (i32, i32) {
    %c0_i32 = arith.constant 0 : i32
    %c0_i32_0 = arith.constant 0 : i32
    %c0_i32_1 = arith.constant 0 : i32
    return %c0_i32, %c0_i32_0 : i32, i32
  }
  func.func @transform_9(%arg0: i32) -> (i32, i32) {
    %c0_i32 = arith.constant 0 : i32
    %c0_i32_0 = arith.constant 0 : i32
    %c0_i32_1 = arith.constant 0 : i32
    return %c0_i32, %c0_i32_0 : i32, i32
  }
  func.func @transform_10(%arg0: i32) -> (i32, i32) {
    %c0_i32 = arith.constant 0 : i32
    %c0_i32_0 = arith.constant 0 : i32
    %c0_i32_1 = arith.constant 0 : i32
    return %c0_i32, %c0_i32_0 : i32, i32
  }
  func.func @transform_11(%arg0: i32) -> (i32, i32) {
    %c0_i32 = arith.constant 0 : i32
    %c0_i32_0 = arith.constant 0 : i32
    return %arg0, %c0_i32 : i32, i32
  }
}

</mosaic_0001>

<llo_original>
// kernel: linnet_forward.1
$region0: #{linnet_forward.1}
  #allocation0 [shape = 'u32[]', space=smem, size = 0x4, offset = 0x4, fixed_abs, tag = 'smem constant byte address 0x4 - core index']
  #allocation1 [shape = 'u32[144,128]{1,0:T(1,128)}', space=vmem, size = 0x12000, scoped, tag = 'internal scratch']
  #allocation2 [shape = 'f32[1,1]{1,0:T(1,128)S(1)}', space=vmem, size = 0x200, scoped, tag = 'scoped memory for linnet_forward.1']
  %s0 = inlined_call_operand.vmem [shape: f32[8,32], index: 0, kind: input, shape index: {}]
  %s1 = inlined_call_operand.vmem [shape: bf16[32,128], index: 1, kind: input, shape index: {}]
  %s2 = inlined_call_operand.vmem [shape: f32[1,128], index: 2, kind: input, shape index: {}]
  %s3 = inlined_call_operand.vmem [shape: bf16[128,64], index: 3, kind: input, shape index: {}]
  %s4 = inlined_call_operand.vmem [shape: f32[1,64], index: 4, kind: input, shape index: {}]
  %s5 = inlined_call_operand.vmem [shape: bf16[64,32], index: 5, kind: input, shape index: {}]
  %s6 = inlined_call_operand.vmem [shape: f32[1,32], index: 6, kind: input, shape index: {}]
  %s7 = inlined_call_operand.vmem [shape: bf16[32,16], index: 7, kind: input, shape index: {}]
  %s8 = inlined_call_operand.vmem [shape: f32[1,16], index: 8, kind: input, shape index: {}]
  %s9 = inlined_call_operand.vmem [shape: bf16[16,1], index: 9, kind: input, shape index: {}]
  %s10 = inlined_call_operand.<no memory space> [shape: f32[1,1], index: 10, kind: input, shape index: {}]
  %s11 = inlined_call_operand.vmem [shape: f32[8,1], index: 11, kind: output, shape index: {}]
  %s12 = sld [smem:[#allocation0]]
  $region54: #{linnet_forward.1} parent=0
    _
  %s14 = ssub.s32 1, %s12
  %s15 = scalar_select 0, %s14, %s12
  %v16 = vstv %s10
  %17 = vst [vmem:[#allocation2] sm:$0x1] %v16
  // Predicated region
  $region2: #{linnet_forward.1} parent=0 // pred_check
    _
  $region3: #{linnet_forward.1} parent=0 // pred_check_branch
    %19 = sbr.rel (0) target = $region5
  $region4: #{linnet_forward.1} parent=0 // pred_region
    _
  $region5: #{linnet_forward.1} parent=0 // pred_fallthru
    _
  // Predicated region
  $region6: #{linnet_forward.1} parent=0 // pred_check
    _
  $region7: #{linnet_forward.1} parent=0 // pred_check_branch
    %21 = sbr.rel (0) target = $region9
  $region8: #{linnet_forward.1} parent=0 // pred_region
    _
  $region9: #{linnet_forward.1} parent=0 // pred_fallthru
    _
  // Predicated region
  $region10: #{linnet_forward.1} parent=0 // pred_check
    _
  $region11: #{linnet_forward.1} parent=0 // pred_check_branch
    %23 = sbr.rel (0) target = $region13
  $region12: #{linnet_forward.1} parent=0 // pred_region
    _
  $region13: #{linnet_forward.1} parent=0 // pred_fallthru
    _
  // Predicated region
  $region14: #{linnet_forward.1} parent=0 // pred_check
    _
  $region15: #{linnet_forward.1} parent=0 // pred_check_branch
    %25 = sbr.rel (0) target = $region17
  $region16: #{linnet_forward.1} parent=0 // pred_region
    _
  $region17: #{linnet_forward.1} parent=0 // pred_fallthru
    _
  // Predicated region
  $region18: #{linnet_forward.1} parent=0 // pred_check
    _
  $region19: #{linnet_forward.1} parent=0 // pred_check_branch
    %27 = sbr.rel (0) target = $region21
  $region20: #{linnet_forward.1} parent=0 // pred_region
    _
  $region21: #{linnet_forward.1} parent=0 // pred_fallthru
    _
  // Predicated region
  $region22: #{linnet_forward.1} parent=0 // pred_check
    _
  $region23: #{linnet_forward.1} parent=0 // pred_check_branch
    %29 = sbr.rel (0) target = $region25
  $region24: #{linnet_forward.1} parent=0 // pred_region
    _
  $region25: #{linnet_forward.1} parent=0 // pred_fallthru
    _
  // Predicated region
  $region26: #{linnet_forward.1} parent=0 // pred_check
    _
  $region27: #{linnet_forward.1} parent=0 // pred_check_branch
    %31 = sbr.rel (0) target = $region29
  $region28: #{linnet_forward.1} parent=0 // pred_region
    _
  $region29: #{linnet_forward.1} parent=0 // pred_fallthru
    _
  // Predicated region
  $region30: #{linnet_forward.1} parent=0 // pred_check
    _
  $region31: #{linnet_forward.1} parent=0 // pred_check_branch
    %33 = sbr.rel (0) target = $region33
  $region32: #{linnet_forward.1} parent=0 // pred_region
    _
  $region33: #{linnet_forward.1} parent=0 // pred_fallthru
    _
  // Predicated region
  $region34: #{linnet_forward.1} parent=0 // pred_check
    _
  $region35: #{linnet_forward.1} parent=0 // pred_check_branch
    %35 = sbr.rel (0) target = $region37
  $region36: #{linnet_forward.1} parent=0 // pred_region
    _
  $region37: #{linnet_forward.1} parent=0 // pred_fallthru
    _
  // Predicated region
  $region38: #{linnet_forward.1} parent=0 // pred_check
    _
  $region39: #{linnet_forward.1} parent=0 // pred_check_branch
    %37 = sbr.rel (0) target = $region41
  $region40: #{linnet_forward.1} parent=0 // pred_region
    _
  $region41: #{linnet_forward.1} parent=0 // pred_fallthru
    _
  // Predicated region
  $region42: #{linnet_forward.1} parent=0 // pred_check
    _
  $region43: #{linnet_forward.1} parent=0 // pred_check_branch
    %39 = sbr.rel (0) target = $region45
  $region44: #{linnet_forward.1} parent=0 // pred_region
    _
  $region45: #{linnet_forward.1} parent=0 // pred_fallthru
    _
  %v41 = vld [vmem:[%s0] sm:$0xff]
  %v42 = vpack.c.bf16 %v41, %v41
  %v43 = vld [vmem:[%s1] sm:$0xf]
  %v44 = vld [vmem:[%s1 + $0x4] sm:$0xf]
  %v45 = vld [vmem:[%s1 + $0x8] sm:$0xf]
  %v46 = vld [vmem:[%s1 + $0xc] sm:$0xf]
  %v47 = vld [vmem:[%s2] sm:$0x1]
  %v49 = vlaneseq
  %v50 = vshrl.u32 %v49, 7
  %v51 = vsub.s32 0, %v50
  %v52 = vrot.slane %v47, %v51
  %v58 = vunpack.c.l.b16 %v43
  %v59 = vunpack.c.l.b16 %v44
  %v60 = vunpack.c.l.b16 %v45
  %v61 = vunpack.c.l.b16 %v46
  %v62 = vpack.c.b16 %v59, %v58
  %v63 = vpack.c.b16 %v61, %v60
  %vm66 = vcmask 261120
  %v68 = vsel %vm66, %v42, 0
  %70 = vmatprep.subr.bf16.mxu0 0
  %71 = vmatpush1.bf16.msra.mxu0 %v62
  %72 = vmatprep.subr.bf16.mxu0 0
  %73 = vmatpush1.bf16.msra.mxu0 %v63
  %74 = vmatprep.subr.bf16.mxu0 0
  %75 = vmatpush1.bf16.msra.mxu0 0
  %76 = vmatprep.subr.bf16.mxu0 0
  %77 = vmatpush1.bf16.msra.mxu0 0
  %78 = vmatprep.subr.bf16.mxu0 0
  %79 = vmatpush1.bf16.msra.mxu0 0
  %80 = vmatprep.subr.bf16.mxu0 0
  %81 = vmatpush1.bf16.msra.mxu0 0
  %82 = vmatprep.subr.bf16.mxu0 0
  %83 = vmatpush1.bf16.msra.mxu0 0
  %84 = vmatprep.subr.bf16.mxu0 0
  %85 = vmatpush1.bf16.msra.mxu0 0
  %86 = vmatprep.subr.bf16.mxu0 0
  %87 = vmatpush1.bf16.msra.mxu0 0
  %88 = vmatprep.subr.bf16.mxu0 0
  %89 = vmatpush1.bf16.msra.mxu0 0
  %90 = vmatprep.subr.bf16.mxu0 0
  %91 = vmatpush1.bf16.msra.mxu0 0
  %92 = vmatprep.subr.bf16.mxu0 0
  %93 = vmatpush1.bf16.msra.mxu0 0
  %94 = vmatprep.subr.bf16.mxu0 0
  %95 = vmatpush1.bf16.msra.mxu0 0
  %96 = vmatprep.subr.bf16.mxu0 0
  %97 = vmatpush1.bf16.msra.mxu0 0
  %98 = vmatprep.subr.bf16.mxu0 0
  %99 = vmatpush1.bf16.msra.mxu0 0
  %100 = vmatprep.subr.bf16.mxu0 0
  %101 = vmatpush1.bf16.msra.mxu0 0
  %102 = vmatprep.mubr.bf16.mxu0 0
  %103 = vmatmul.mubr.bf16.gmra.mrb[0].mxu0 %v68
  %v104 = vpop.f32.mrb[0].mxu0
  %v105 = vadd.f32 %v52, %v104
  %v106 = vpop.f32.mrb[0].mxu0
  %v107 = vpop.f32.mrb[0].mxu0
  %v108 = vpop.f32.mrb[0].mxu0
  %109 = vdwg.mxu0
  %v110 = vmax.f32 %v105, 0.0
  %v111 = vpack.c.bf16 %v110, %v110
  %v112 = vld [vmem:[%s3] sm:$0xf]
  %v113 = vld [vmem:[%s3 + $0x4] sm:$0xf]
  %v114 = vld [vmem:[%s3 + $0x8] sm:$0xf]
  %v115 = vld [vmem:[%s3 + $0xc] sm:$0xf]
  %v116 = vld [vmem:[%s3 + $0x10] sm:$0xf]
  %v117 = vld [vmem:[%s3 + $0x14] sm:$0xf]
  %v118 = vld [vmem:[%s3 + $0x18] sm:$0xf]
  %v119 = vld [vmem:[%s3 + $0x1c] sm:$0xf]
  %v120 = vld [vmem:[%s3 + $0x20] sm:$0xf]
  %v121 = vld [vmem:[%s3 + $0x24] sm:$0xf]
  %v122 = vld [vmem:[%s3 + $0x28] sm:$0xf]
  %v123 = vld [vmem:[%s3 + $0x2c] sm:$0xf]
  %v124 = vld [vmem:[%s3 + $0x30] sm:$0xf]
  %v125 = vld [vmem:[%s3 + $0x34] sm:$0xf]
  %v126 = vld [vmem:[%s3 + $0x38] sm:$0xf]
  %v127 = vld [vmem:[%s3 + $0x3c] sm:$0xf]
  %v128 = vld [vmem:[%s4] sm:$0x1]
  %v130 = vlaneseq
  %v131 = vshrl.u32 %v130, 7
  %v132 = vsub.s32 0, %v131
  %v133 = vrot.slane %v128, %v132
  %v151 = vunpack.c.l.b16 %v112
  %v152 = vunpack.c.l.b16 %v113
  %v153 = vunpack.c.l.b16 %v114
  %v154 = vunpack.c.l.b16 %v115
  %v155 = vunpack.c.l.b16 %v116
  %v156 = vunpack.c.l.b16 %v117
  %v157 = vunpack.c.l.b16 %v118
  %v158 = vunpack.c.l.b16 %v119
  %v159 = vunpack.c.l.b16 %v120
  %v160 = vunpack.c.l.b16 %v121
  %v161 = vunpack.c.l.b16 %v122
  %v162 = vunpack.c.l.b16 %v123
  %v163 = vunpack.c.l.b16 %v124
  %v164 = vunpack.c.l.b16 %v125
  %v165 = vunpack.c.l.b16 %v126
  %v166 = vunpack.c.l.b16 %v127
  %v167 = vpack.c.b16 %v152, %v151
  %v168 = vpack.c.b16 %v154, %v153
  %v169 = vpack.c.b16 %v156, %v155
  %v170 = vpack.c.b16 %v158, %v157
  %v171 = vpack.c.b16 %v160, %v159
  %v172 = vpack.c.b16 %v162, %v161
  %v173 = vpack.c.b16 %v164, %v163
  %v174 = vpack.c.b16 %v166, %v165
  %183 = vmatprep.subr.bf16.mxu0 0
  %184 = vmatpush1.bf16.msra.mxu0 %v167
  %185 = vmatprep.subr.bf16.mxu0 0
  %186 = vmatpush1.bf16.msra.mxu0 %v168
  %187 = vmatprep.subr.bf16.mxu0 0
  %188 = vmatpush1.bf16.msra.mxu0 %v169
  %189 = vmatprep.subr.bf16.mxu0 0
  %190 = vmatpush1.bf16.msra.mxu0 %v170
  %191 = vmatprep.subr.bf16.mxu0 0
  %192 = vmatpush1.bf16.msra.mxu0 %v171
  %193 = vmatprep.subr.bf16.mxu0 0
  %194 = vmatpush1.bf16.msra.mxu0 %v172
  %195 = vmatprep.subr.bf16.mxu0 0
  %196 = vmatpush1.bf16.msra.mxu0 %v173
  %197 = vmatprep.subr.bf16.mxu0 0
  %198 = vmatpush1.bf16.msra.mxu0 %v174
  %199 = vmatprep.subr.bf16.mxu0 0
  %200 = vmatpush1.bf16.msra.mxu0 0
  %201 = vmatprep.subr.bf16.mxu0 0
  %202 = vmatpush1.bf16.msra.mxu0 0
  %203 = vmatprep.subr.bf16.mxu0 0
  %204 = vmatpush1.bf16.msra.mxu0 0
  %205 = vmatprep.subr.bf16.mxu0 0
  %206 = vmatpush1.bf16.msra.mxu0 0
  %207 = vmatprep.subr.bf16.mxu0 0
  %208 = vmatpush1.bf16.msra.mxu0 0
  %209 = vmatprep.subr.bf16.mxu0 0
  %210 = vmatpush1.bf16.msra.mxu0 0
  %211 = vmatprep.subr.bf16.mxu0 0
  %212 = vmatpush1.bf16.msra.mxu0 0
  %213 = vmatprep.subr.bf16.mxu0 0
  %214 = vmatpush1.bf16.msra.mxu0 0
  %215 = vmatprep.mubr.bf16.mxu0 0
  %216 = vmatmul.mubr.bf16.gmra.mrb[0].mxu0 %v111
  %v217 = vpop.f32.mrb[0].mxu0
  %v218 = vadd.f32 %v133, %v217
  %v219 = vpop.f32.mrb[0].mxu0
  %v220 = vpop.f32.mrb[0].mxu0
  %v221 = vpop.f32.mrb[0].mxu0
  %222 = vdwg.mxu0
  %v223 = vmax.f32 %v218, 0.0
  %v224 = vpack.c.bf16 %v223, %v223
  %v225 = vld [vmem:[%s5] sm:$0xf]
  %v226 = vld [vmem:[%s5 + $0x4] sm:$0xf]
  %v227 = vld [vmem:[%s5 + $0x8] sm:$0xf]
  %v228 = vld [vmem:[%s5 + $0xc] sm:$0xf]
  %v229 = vld [vmem:[%s5 + $0x10] sm:$0xf]
  %v230 = vld [vmem:[%s5 + $0x14] sm:$0xf]
  %v231 = vld [vmem:[%s5 + $0x18] sm:$0xf]
  %v232 = vld [vmem:[%s5 + $0x1c] sm:$0xf]
  %v233 = vld [vmem:[%s6] sm:$0x1]
  %v235 = vlaneseq
  %v236 = vshrl.u32 %v235, 7
  %v237 = vsub.s32 0, %v236
  %v238 = vrot.slane %v233, %v237
  %v248 = vunpack.c.l.b16 %v225
  %v249 = vunpack.c.l.b16 %v226
  %v250 = vunpack.c.l.b16 %v227
  %v251 = vunpack.c.l.b16 %v228
  %v252 = vunpack.c.l.b16 %v229
  %v253 = vunpack.c.l.b16 %v230
  %v254 = vunpack.c.l.b16 %v231
  %v255 = vunpack.c.l.b16 %v232
  %v256 = vpack.c.b16 %v249, %v248
  %v257 = vpack.c.b16 %v251, %v250
  %v258 = vpack.c.b16 %v253, %v252
  %v259 = vpack.c.b16 %v255, %v254
  %vm264 = vcmask 523264
  %v266 = vsel %vm264, %v224, 0
  %268 = vmatprep.subr.bf16.mxu0 0
  %269 = vmatpush1.bf16.msra.mxu0 %v256
  %270 = vmatprep.subr.bf16.mxu0 0
  %271 = vmatpush1.bf16.msra.mxu0 %v257
  %272 = vmatprep.subr.bf16.mxu0 0
  %273 = vmatpush1.bf16.msra.mxu0 %v258
  %274 = vmatprep.subr.bf16.mxu0 0
  %275 = vmatpush1.bf16.msra.mxu0 %v259
  %276 = vmatprep.subr.bf16.mxu0 0
  %277 = vmatpush1.bf16.msra.mxu0 0
  %278 = vmatprep.subr.bf16.mxu0 0
  %279 = vmatpush1.bf16.msra.mxu0 0
  %280 = vmatprep.subr.bf16.mxu0 0
  %281 = vmatpush1.bf16.msra.mxu0 0
  %282 = vmatprep.subr.bf16.mxu0 0
  %283 = vmatpush1.bf16.msra.mxu0 0
  %284 = vmatprep.subr.bf16.mxu0 0
  %285 = vmatpush1.bf16.msra.mxu0 0
  %286 = vmatprep.subr.bf16.mxu0 0
  %287 = vmatpush1.bf16.msra.mxu0 0
  %288 = vmatprep.subr.bf16.mxu0 0
  %289 = vmatpush1.bf16.msra.mxu0 0
  %290 = vmatprep.subr.bf16.mxu0 0
  %291 = vmatpush1.bf16.msra.mxu0 0
  %292 = vmatprep.subr.bf16.mxu0 0
  %293 = vmatpush1.bf16.msra.mxu0 0
  %294 = vmatprep.subr.bf16.mxu0 0
  %295 = vmatpush1.bf16.msra.mxu0 0
  %296 = vmatprep.subr.bf16.mxu0 0
  %297 = vmatpush1.bf16.msra.mxu0 0
  %298 = vmatprep.subr.bf16.mxu0 0
  %299 = vmatpush1.bf16.msra.mxu0 0
  %300 = vmatprep.mubr.bf16.mxu0 0
  %301 = vmatmul.mubr.bf16.gmra.mrb[0].mxu0 %v266
  %v302 = vpop.f32.mrb[0].mxu0
  %v303 = vadd.f32 %v238, %v302
  %v304 = vpop.f32.mrb[0].mxu0
  %v305 = vpop.f32.mrb[0].mxu0
  %v306 = vpop.f32.mrb[0].mxu0
  %307 = vdwg.mxu0
  %v308 = vmax.f32 %v303, 0.0
  %v309 = vpack.c.bf16 %v308, %v308
  %v310 = vld [vmem:[%s7] sm:$0xf]
  %v311 = vld [vmem:[%s7 + $0x4] sm:$0xf]
  %v312 = vld [vmem:[%s7 + $0x8] sm:$0xf]
  %v313 = vld [vmem:[%s7 + $0xc] sm:$0xf]
  %v314 = vld [vmem:[%s8] sm:$0x1]
  %v316 = vlaneseq
  %v317 = vshrl.u32 %v316, 7
  %v318 = vsub.s32 0, %v317
  %v319 = vrot.slane %v314, %v318
  %v325 = vunpack.c.l.b16 %v310
  %v326 = vunpack.c.l.b16 %v311
  %v327 = vunpack.c.l.b16 %v312
  %v328 = vunpack.c.l.b16 %v313
  %v329 = vpack.c.b16 %v326, %v325
  %v330 = vpack.c.b16 %v328, %v327
  %v334 = vsel %vm66, %v309, 0
  %336 = vmatprep.subr.bf16.mxu0 0
  %337 = vmatpush1.bf16.msra.mxu0 %v329
  %338 = vmatprep.subr.bf16.mxu0 0
  %339 = vmatpush1.bf16.msra.mxu0 %v330
  %340 = vmatprep.subr.bf16.mxu0 0
  %341 = vmatpush1.bf16.msra.mxu0 0
  %342 = vmatprep.subr.bf16.mxu0 0
  %343 = vmatpush1.bf16.msra.mxu0 0
  %344 = vmatprep.subr.bf16.mxu0 0
  %345 = vmatpush1.bf16.msra.mxu0 0
  %346 = vmatprep.subr.bf16.mxu0 0
  %347 = vmatpush1.bf16.msra.mxu0 0
  %348 = vmatprep.subr.bf16.mxu0 0
  %349 = vmatpush1.bf16.msra.mxu0 0
  %350 = vmatprep.subr.bf16.mxu0 0
  %351 = vmatpush1.bf16.msra.mxu0 0
  %352 = vmatprep.subr.bf16.mxu0 0
  %353 = vmatpush1.bf16.msra.mxu0 0
  %354 = vmatprep.subr.bf16.mxu0 0
  %355 = vmatpush1.bf16.msra.mxu0 0
  %356 = vmatprep.subr.bf16.mxu0 0
  %357 = vmatpush1.bf16.msra.mxu0 0
  %358 = vmatprep.subr.bf16.mxu0 0
  %359 = vmatpush1.bf16.msra.mxu0 0
  %360 = vmatprep.subr.bf16.mxu0 0
  %361 = vmatpush1.bf16.msra.mxu0 0
  %362 = vmatprep.subr.bf16.mxu0 0
  %363 = vmatpush1.bf16.msra.mxu0 0
  %364 = vmatprep.subr.bf16.mxu0 0
  %365 = vmatpush1.bf16.msra.mxu0 0
  %366 = vmatprep.subr.bf16.mxu0 0
  %367 = vmatpush1.bf16.msra.mxu0 0
  %368 = vmatprep.mubr.bf16.mxu0 0
  %369 = vmatmul.mubr.bf16.gmra.mrb[0].mxu0 %v334
  %v370 = vpop.f32.mrb[0].mxu0
  %v371 = vadd.f32 %v319, %v370
  %v372 = vpop.f32.mrb[0].mxu0
  %v373 = vpop.f32.mrb[0].mxu0
  %v374 = vpop.f32.mrb[0].mxu0
  %375 = vdwg.mxu0
  %v376 = vmax.f32 %v371, 0.0
  %v377 = vpack.c.bf16 %v376, %v376
  %v378 = vld [vmem:[%s9] sm:$0xf]
  %v379 = vld [vmem:[%s9 + $0x4] sm:$0xf]
  %v380 = vld [vmem:[#allocation2] sm:$0x1]
  %v382 = vlaneseq
  %v383 = vshrl.u32 %v382, 7
  %v384 = vsub.s32 0, %v383
  %v385 = vrot.slane %v380, %v384
  %v389 = vunpack.c.l.b16 %v378
  %v390 = vunpack.c.l.b16 %v379
  %v391 = vpack.c.b16 %v390, %v389
  %vm393 = vcmask 130048
  %v395 = vsel %vm393, %v377, 0
  %397 = vmatprep.subr.bf16.mxu0 0
  %398 = vmatpush1.bf16.msra.mxu0 %v391
  %399 = vmatprep.subr.bf16.mxu0 0
  %400 = vmatpush1.bf16.msra.mxu0 0
  %401 = vmatprep.subr.bf16.mxu0 0
  %402 = vmatpush1.bf16.msra.mxu0 0
  %403 = vmatprep.subr.bf16.mxu0 0
  %404 = vmatpush1.bf16.msra.mxu0 0
  %405 = vmatprep.subr.bf16.mxu0 0
  %406 = vmatpush1.bf16.msra.mxu0 0
  %407 = vmatprep.subr.bf16.mxu0 0
  %408 = vmatpush1.bf16.msra.mxu0 0
  %409 = vmatprep.subr.bf16.mxu0 0
  %410 = vmatpush1.bf16.msra.mxu0 0
  %411 = vmatprep.subr.bf16.mxu0 0
  %412 = vmatpush1.bf16.msra.mxu0 0
  %413 = vmatprep.subr.bf16.mxu0 0
  %414 = vmatpush1.bf16.msra.mxu0 0
  %415 = vmatprep.subr.bf16.mxu0 0
  %416 = vmatpush1.bf16.msra.mxu0 0
  %417 = vmatprep.subr.bf16.mxu0 0
  %418 = vmatpush1.bf16.msra.mxu0 0
  %419 = vmatprep.subr.bf16.mxu0 0
  %420 = vmatpush1.bf16.msra.mxu0 0
  %421 = vmatprep.subr.bf16.mxu0 0
  %422 = vmatpush1.bf16.msra.mxu0 0
  %423 = vmatprep.subr.bf16.mxu0 0
  %424 = vmatpush1.bf16.msra.mxu0 0
  %425 = vmatprep.subr.bf16.mxu0 0
  %426 = vmatpush1.bf16.msra.mxu0 0
  %427 = vmatprep.subr.bf16.mxu0 0
  %428 = vmatpush1.bf16.msra.mxu0 0
  %429 = vmatprep.mubr.bf16.mxu0 0
  %430 = vmatmul.mubr.bf16.gmra.mrb[0].mxu0 %v395
  %v431 = vpop.f32.mrb[0].mxu0
  %v432 = vadd.f32 %v385, %v431
  %v433 = vpop.f32.mrb[0].mxu0
  %v434 = vpop.f32.mrb[0].mxu0
  %v435 = vpop.f32.mrb[0].mxu0
  %436 = vdwg.mxu0
  %v437 = vxor.u32 %v432, 2147483648
  %v438 = vmul.f32 %v437, 1.442695
  %v439 = vpow.pop %v438
  %v440 = vadd.f32 %v439, 1.0
  %v441 = vrcp.pop %v440
  %v442 = vmul.f32 1.0, %v441
  %vm443 = vcmask 7168
  %444 = vst.msk [vmem:[%s11] sm:$0xff] %vm443, %v442
  // Predicated region
  $region46: #{linnet_forward.1} parent=0 // pred_check
    _
  $region47: #{linnet_forward.1} parent=0 // pred_check_branch
    %446 = sbr.rel (0) target = $region49
  $region48: #{linnet_forward.1} parent=0 // pred_region
    _
  $region49: #{linnet_forward.1} parent=0 // pred_fallthru
    _
  // Predicated region
  $region50: #{linnet_forward.1} parent=0 // pred_check
    _
  $region51: #{linnet_forward.1} parent=0 // pred_check_branch
    %448 = sbr.rel (0) target = $region53
  $region52: #{linnet_forward.1} parent=0 // pred_region
    _
  $region53: #{linnet_forward.1} parent=0 // pred_fallthru
    _

</llo_original>
